<compile_context>
chip_gen: v7x
topology: tpu7x:2x2x1
jax: 0.10.0
libtpu: 0.0.40
codegen_flags: <defaults>
</compile_context>

<pallas_src>
import jax
import jax.numpy as jnp
from jax.experimental import pallas as pl
from jax.experimental.pallas import tpu as pltpu

HIDDEN = 64
BOTTLENECK = 16
NEG_SLOPE = 0.2


def _leaky_relu(v):
    # slope in (0, 1) => max(v, slope*v) == LeakyReLU(v); single VALU op.
    return jnp.maximum(v, NEG_SLOPE * v)


def _round_up(n, m):
    return ((n + m - 1) // m) * m


# --------------------------------------------------------------------------- #
# Kernel
# --------------------------------------------------------------------------- #
def autoencoder_kernel(
    x_ref,
    w1_ref, b1_ref,
    w2_ref, b2_ref,
    w34_ref, b34_ref,   # folded bottleneck pair (32 -> 32)
    w5_ref, b5_ref,
    w6_ref, b6_ref,
    out_ref,
):
    cdt = w1_ref.dtype  # compute dtype for the MXU inputs (bf16 or f32)

    def dense(h, w_ref, b_ref):
        # MXU matmul in storage dtype, f32 accumulation; bias add in f32.
        return (
            jnp.dot(h.astype(cdt), w_ref[...], preferred_element_type=jnp.float32)
            + b_ref[...]
        )

    # x is read in its native dtype; the cast happens here (hidden under DMA).
    h = _leaky_relu(dense(x_ref[...], w1_ref, b1_ref))   # D  -> 64  (Dropout -> id)
    h = _leaky_relu(dense(h, w2_ref, b2_ref))            # 64 -> 32  (Dropout -> id)
    h = _leaky_relu(dense(h, w34_ref, b34_ref))          # 32 -> (16) -> 32 folded
    h = _leaky_relu(dense(h, w5_ref, b5_ref))            # 32 -> 64
    out_ref[...] = dense(h, w6_ref, b6_ref).astype(out_ref.dtype)   # 64 -> D


# --------------------------------------------------------------------------- #
# Host-side helpers
# --------------------------------------------------------------------------- #
def _fold_params(params, compute_dtype):
    """Fold w3@w4 (no nonlinearity between them in eval mode) and cast weights."""
    w3 = params["w3"].astype(jnp.float32)
    w4 = params["w4"].astype(jnp.float32)
    w34 = w3 @ w4
    b34 = params["b3"].astype(jnp.float32) @ w4 + params["b4"].astype(jnp.float32)
    weights = [params["w1"], params["w2"], w34, params["w5"], params["w6"]]
    biases = [params["b1"], params["b2"], b34, params["b5"], params["b6"]]
    weights = [jnp.asarray(w, jnp.float32).astype(compute_dtype) for w in weights]
    biases = [jnp.asarray(b, jnp.float32) for b in biases]  # biases stay f32
    return weights, biases


def _choose_tile_rows(B, D_in, D_out, in_itemsize, out_itemsize, tile_rows=None):
    """Byte-budget + VMEM-aware batch tile (multiple of 8 sublanes)."""
    if tile_rows is not None:
        tile = int(tile_rows)
    else:
        # ~2 MiB per input-activation tile -> per-step overhead <1% and the
        # measured ~85%-of-HBM-roofline regime.
        target_tile_bytes = 2 << 20
        tile = target_tile_bytes // max(1, D_in * in_itemsize)
        # VMEM ceiling: double-buffered x+out tiles + f32 intermediates, with
        # headroom.  Derived from the device so the same code fits v5e/v6e
        # (128 MiB) and v7x (64 MiB per TC).
        try:
            vmem_cap = int(pltpu.get_tpu_info().vmem_capacity_bytes)
        except Exception:
            vmem_cap = 64 << 20  # conservative (v7x per-TC)
        buf_budget = min(vmem_cap // 4, 12 << 20)
        per_row = (
            2 * (D_in * in_itemsize + D_out * out_itemsize)   # double-buffered IO
            + (3 * HIDDEN + D_out) * 4                        # f32 intermediates
        )
        tile = min(tile, buf_budget // per_row)
    tile = max(8, (tile // 8) * 8)
    tile = min(tile, _round_up(B, 8))
    # Keep at least 2 grid steps when possible so the v7x megacore can shard
    # the "parallel" batch axis across both TensorCores (no-op on v5e/v6e).
    if B >= 16 and pl.cdiv(B, tile) < 2:
        tile = max(8, _round_up(pl.cdiv(B, 2), 8))
    return tile


def advanced_autoencoder_forward(x, params, *, compute_dtype=jnp.bfloat16,
                                 out_dtype=None, tile_rows=None):
    """x: (B, D). params: dict w1..w6 / b1..b6. Returns (B, D) in out_dtype."""
    B, D = x.shape
    if out_dtype is None:
        out_dtype = x.dtype

    weights, biases = _fold_params(params, compute_dtype)

    # Lane-dense output: pad the last layer's output features to a multiple of
    # 128 so the out_ref store is an unmasked vst (one-time weight padding).
    D_out = D if D % 128 == 0 else _round_up(D, 128)
    if D_out != D:
        weights[-1] = jnp.pad(weights[-1], ((0, 0), (0, D_out - D)))
        biases[-1] = jnp.pad(biases[-1], ((0, 0), (0, D_out - D)))

    in_itemsize = x.dtype.itemsize
    out_itemsize = jnp.dtype(out_dtype).itemsize
    tile = _choose_tile_rows(B, D, D_out, in_itemsize, out_itemsize, tile_rows)
    assert tile % 8 == 0
    grid = (pl.cdiv(B, tile),)   # ragged B handled by a partial last block

    # Activations tiled over batch; weights/biases VMEM-resident (constant map).
    wb_args, wb_specs = [], []
    for w, b in zip(weights, biases):
        wb_args += [w, b]
        wb_specs += [
            pl.BlockSpec(w.shape, lambda i: (0, 0)),
            pl.BlockSpec(b.shape, lambda i: (0, 0)),
        ]

    wb_bytes = sum(int(a.size) * a.dtype.itemsize for a in wb_args)
    flops = 2 * B * (
        D * HIDDEN
        + HIDDEN * (HIDDEN // 2)
        + (HIDDEN // 2) * (HIDDEN // 2)
        + (HIDDEN // 2) * HIDDEN
        + HIDDEN * D
    )
    cost = pl.CostEstimate(
        flops=flops,
        transcendentals=0,
        bytes_accessed=B * D * in_itemsize + B * D_out * out_itemsize + wb_bytes,
    )

    # Scoped-VMEM limit consistent with the chosen tile (double-buffered IO +
    # weights + f32 intermediates, with 2x headroom), capped well under the
    # 64 MiB per-TC physical limit of v7x.
    vmem_needed = (
        2 * tile * (D * in_itemsize + D_out * out_itemsize)
        + wb_bytes
        + tile * (3 * HIDDEN + D_out) * 4
    )
    vmem_limit = int(min(max(2 * vmem_needed, 16 << 20), 32 << 20))

    out = pl.pallas_call(
        autoencoder_kernel,
        out_shape=jax.ShapeDtypeStruct((B, D_out), out_dtype),
        grid=grid,
        in_specs=[pl.BlockSpec((tile, D), lambda i: (i, 0))] + wb_specs,
        out_specs=pl.BlockSpec((tile, D_out), lambda i: (i, 0)),
        compiler_params=pltpu.CompilerParams(
            dimension_semantics=("parallel",),
            vmem_limit_bytes=vmem_limit,
        ),
        cost_estimate=cost,
    )(x, *wb_args)

    return out if D_out == D else out[:, :D]


def init_params(key, input_size):
    """Deterministic init mimicking PyTorch nn.Linear default (uniform ±1/sqrt(fan_in))."""
    dims = [
        (input_size, HIDDEN),        # encoder linear 1
        (HIDDEN, HIDDEN // 2),       # encoder linear 2
        (HIDDEN // 2, BOTTLENECK),   # encoder linear 3
        (BOTTLENECK, HIDDEN // 2),   # decoder linear 1
        (HIDDEN // 2, HIDDEN),       # decoder linear 2
        (HIDDEN, input_size),        # decoder linear 3
    ]
    params = {}
    for i, (fan_in, fan_out) in enumerate(dims, start=1):
        key, kw, kb = jax.random.split(key, 3)
        bound = 1.0 / jnp.sqrt(fan_in)
        params[f"w{i}"] = jax.random.uniform(
            kw, (fan_in, fan_out), jnp.float32, -bound, bound
        )
        params[f"b{i}"] = jax.random.uniform(
            kb, (1, fan_out), jnp.float32, -bound, bound
        )
    return params


def reference_forward(x, params):
    """Pure-JAX reference (unfused 6-layer, eval-mode dropout) for correctness check."""
    def lrelu(v):
        return jnp.where(v > 0, v, NEG_SLOPE * v)
    h = lrelu(x @ params["w1"] + params["b1"])
    h = lrelu(h @ params["w2"] + params["b2"])
    z = h @ params["w3"] + params["b3"]
    h = lrelu(z @ params["w4"] + params["b4"])
    h = lrelu(h @ params["w5"] + params["b5"])
    return h @ params["w6"] + params["b6"]


if __name__ == "__main__":
    key = jax.random.PRNGKey(0)

    # ---- Case 1: D multiple of 128, ragged batch (partial last block) ------
    INPUT_SIZE, BATCH = 128, 20
    key, kx, kp = jax.random.split(key, 3)
    x = jax.random.normal(kx, (BATCH, INPUT_SIZE), jnp.float32)
    params = init_params(kp, INPUT_SIZE)
    ref = reference_forward(x, params)

    # f32 compute path (exact check).
    out_f32 = jax.block_until_ready(
        advanced_autoencoder_forward(x, params, compute_dtype=jnp.float32)
    )
    assert out_f32.shape == (BATCH, INPUT_SIZE) and out_f32.dtype == jnp.float32
    assert jnp.allclose(out_f32, ref, atol=1e-4, rtol=1e-4), "f32 mismatch vs reference"

    # Default path: bf16 weights/MXU, f32 accumulation, f32 output (HBM-optimized).
    out_mixed = jax.block_until_ready(advanced_autoencoder_forward(x, params))
    assert out_mixed.shape == (BATCH, INPUT_SIZE) and out_mixed.dtype == jnp.float32
    assert jnp.allclose(out_mixed, ref, atol=1e-1, rtol=1e-1), "bf16 mismatch vs reference"

    # ---- Case 2: D not a multiple of 128 (lane-padded w6/out) --------------
    INPUT_SIZE2, BATCH2 = 96, 12
    key, kx2, kp2 = jax.random.split(key, 3)
    x2 = jax.random.normal(kx2, (BATCH2, INPUT_SIZE2), jnp.float32)
    params2 = init_params(kp2, INPUT_SIZE2)
    ref2 = reference_forward(x2, params2)
    out2 = jax.block_until_ready(
        advanced_autoencoder_forward(x2, params2, compute_dtype=jnp.float32)
    )
    assert out2.shape == (BATCH2, INPUT_SIZE2)
    assert jnp.allclose(out2, ref2, atol=1e-4, rtol=1e-4), "padded-D mismatch vs reference"

    print("KERNEL_OK")
</pallas_src>

<mosaic_0001>
module attributes {stable_mosaic.version = 11 : i64} {
  func.func @autoencoder_kernel(%arg0: i32, %arg1: memref<16x128xf32, #tpu.memory_space<vmem>>, %arg2: memref<128x64xf32, #tpu.memory_space<vmem>>, %arg3: memref<1x64xf32, #tpu.memory_space<vmem>>, %arg4: memref<64x32xf32, #tpu.memory_space<vmem>>, %arg5: memref<1x32xf32, #tpu.memory_space<vmem>>, %arg6: memref<32x32xf32, #tpu.memory_space<vmem>>, %arg7: memref<1x32xf32, #tpu.memory_space<vmem>>, %arg8: memref<32x64xf32, #tpu.memory_space<vmem>>, %arg9: memref<1x64xf32, #tpu.memory_space<vmem>>, %arg10: memref<64x128xf32, #tpu.memory_space<vmem>>, %arg11: memref<1x128xf32, #tpu.memory_space<vmem>>, %arg12: memref<16x128xf32, #tpu.memory_space<vmem>>) attributes {dimension_semantics = [#tpu.dimension_semantics<parallel>], iteration_bounds = array<i64: 2>, scalar_prefetch = 0 : i64, scratch_operands = 0 : i64, tpu.core_type = #tpu.core_type<tc>, window_params = [{transform_indices = @transform_0, window_bounds = array<i64: 16, 128>}, {pipeline_mode = #tpu.pipeline_mode<synchronous>, transform_indices = @transform_1, window_bounds = array<i64: 128, 64>}, {pipeline_mode = #tpu.pipeline_mode<synchronous>, transform_indices = @transform_2, window_bounds = array<i64: 1, 64>}, {pipeline_mode = #tpu.pipeline_mode<synchronous>, transform_indices = @transform_3, window_bounds = array<i64: 64, 32>}, {pipeline_mode = #tpu.pipeline_mode<synchronous>, transform_indices = @transform_4, window_bounds = array<i64: 1, 32>}, {pipeline_mode = #tpu.pipeline_mode<synchronous>, transform_indices = @transform_5, window_bounds = array<i64: 32, 32>}, {pipeline_mode = #tpu.pipeline_mode<synchronous>, transform_indices = @transform_6, window_bounds = array<i64: 1, 32>}, {pipeline_mode = #tpu.pipeline_mode<synchronous>, transform_indices = @transform_7, window_bounds = array<i64: 32, 64>}, {pipeline_mode = #tpu.pipeline_mode<synchronous>, transform_indices = @transform_8, window_bounds = array<i64: 1, 64>}, {pipeline_mode = #tpu.pipeline_mode<synchronous>, transform_indices = @transform_9, window_bounds = array<i64: 64, 128>}, {pipeline_mode = #tpu.pipeline_mode<synchronous>, transform_indices = @transform_10, window_bounds = array<i64: 1, 128>}, {transform_indices = @transform_11, window_bounds = array<i64: 16, 128>}]} {
    %c0 = arith.constant 0 : index
    %c0_0 = arith.constant 0 : index
    %0 = vector.load %arg1[%c0, %c0_0] : memref<16x128xf32, #tpu.memory_space<vmem>>, vector<16x128xf32>
    %c0_1 = arith.constant 0 : index
    %c0_2 = arith.constant 0 : index
    %1 = vector.load %arg2[%c0_1, %c0_2] : memref<128x64xf32, #tpu.memory_space<vmem>>, vector<128x64xf32>
    %cst = arith.constant dense<0.000000e+00> : vector<16x64xf32>
    %2 = tpu.matmul %0, %1, %cst {dimension_numbers = #tpu.dot_dimension_numbers<[1], [0], [0], [1], [0, 0, 1, 1], [], []>} : vector<16x128xf32>, vector<128x64xf32>, vector<16x64xf32> -> vector<16x64xf32>
    %c0_3 = arith.constant 0 : index
    %c0_4 = arith.constant 0 : index
    %3 = vector.load %arg3[%c0_3, %c0_4] : memref<1x64xf32, #tpu.memory_space<vmem>>, vector<1x64xf32>
    %4 = vector.broadcast %3 : vector<1x64xf32> to vector<16x64xf32>
    %5 = arith.addf %2, %4 : vector<16x64xf32>
    %cst_5 = arith.constant 2.000000e-01 : f32
    %6 = vector.broadcast %cst_5 : f32 to vector<16x64xf32>
    %7 = arith.mulf %6, %5 : vector<16x64xf32>
    %8 = arith.maximumf %5, %7 : vector<16x64xf32>
    %c0_6 = arith.constant 0 : index
    %c0_7 = arith.constant 0 : index
    %9 = vector.load %arg4[%c0_6, %c0_7] : memref<64x32xf32, #tpu.memory_space<vmem>>, vector<64x32xf32>
    %cst_8 = arith.constant dense<0.000000e+00> : vector<16x32xf32>
    %10 = tpu.matmul %8, %9, %cst_8 {dimension_numbers = #tpu.dot_dimension_numbers<[1], [0], [0], [1], [0, 0, 1, 1], [], []>} : vector<16x64xf32>, vector<64x32xf32>, vector<16x32xf32> -> vector<16x32xf32>
    %c0_9 = arith.constant 0 : index
    %c0_10 = arith.constant 0 : index
    %11 = vector.load %arg5[%c0_9, %c0_10] : memref<1x32xf32, #tpu.memory_space<vmem>>, vector<1x32xf32>
    %12 = vector.broadcast %11 : vector<1x32xf32> to vector<16x32xf32>
    %13 = arith.addf %10, %12 : vector<16x32xf32>
    %cst_11 = arith.constant 2.000000e-01 : f32
    %14 = vector.broadcast %cst_11 : f32 to vector<16x32xf32>
    %15 = arith.mulf %14, %13 : vector<16x32xf32>
    %16 = arith.maximumf %13, %15 : vector<16x32xf32>
    %c0_12 = arith.constant 0 : index
    %c0_13 = arith.constant 0 : index
    %17 = vector.load %arg6[%c0_12, %c0_13] : memref<32x32xf32, #tpu.memory_space<vmem>>, vector<32x32xf32>
    %cst_14 = arith.constant dense<0.000000e+00> : vector<16x32xf32>
    %18 = tpu.matmul %16, %17, %cst_14 {dimension_numbers = #tpu.dot_dimension_numbers<[1], [0], [0], [1], [0, 0, 1, 1], [], []>} : vector<16x32xf32>, vector<32x32xf32>, vector<16x32xf32> -> vector<16x32xf32>
    %c0_15 = arith.constant 0 : index
    %c0_16 = arith.constant 0 : index
    %19 = vector.load %arg7[%c0_15, %c0_16] : memref<1x32xf32, #tpu.memory_space<vmem>>, vector<1x32xf32>
    %20 = vector.broadcast %19 : vector<1x32xf32> to vector<16x32xf32>
    %21 = arith.addf %18, %20 : vector<16x32xf32>
    %cst_17 = arith.constant 2.000000e-01 : f32
    %22 = vector.broadcast %cst_17 : f32 to vector<16x32xf32>
    %23 = arith.mulf %22, %21 : vector<16x32xf32>
    %24 = arith.maximumf %21, %23 : vector<16x32xf32>
    %c0_18 = arith.constant 0 : index
    %c0_19 = arith.constant 0 : index
    %25 = vector.load %arg8[%c0_18, %c0_19] : memref<32x64xf32, #tpu.memory_space<vmem>>, vector<32x64xf32>
    %cst_20 = arith.constant dense<0.000000e+00> : vector<16x64xf32>
    %26 = tpu.matmul %24, %25, %cst_20 {dimension_numbers = #tpu.dot_dimension_numbers<[1], [0], [0], [1], [0, 0, 1, 1], [], []>} : vector<16x32xf32>, vector<32x64xf32>, vector<16x64xf32> -> vector<16x64xf32>
    %c0_21 = arith.constant 0 : index
    %c0_22 = arith.constant 0 : index
    %27 = vector.load %arg9[%c0_21, %c0_22] : memref<1x64xf32, #tpu.memory_space<vmem>>, vector<1x64xf32>
    %28 = vector.broadcast %27 : vector<1x64xf32> to vector<16x64xf32>
    %29 = arith.addf %26, %28 : vector<16x64xf32>
    %cst_23 = arith.constant 2.000000e-01 : f32
    %30 = vector.broadcast %cst_23 : f32 to vector<16x64xf32>
    %31 = arith.mulf %30, %29 : vector<16x64xf32>
    %32 = arith.maximumf %29, %31 : vector<16x64xf32>
    %c0_24 = arith.constant 0 : index
    %c0_25 = arith.constant 0 : index
    %33 = vector.load %arg10[%c0_24, %c0_25] : memref<64x128xf32, #tpu.memory_space<vmem>>, vector<64x128xf32>
    %cst_26 = arith.constant dense<0.000000e+00> : vector<16x128xf32>
    %34 = tpu.matmul %32, %33, %cst_26 {dimension_numbers = #tpu.dot_dimension_numbers<[1], [0], [0], [1], [0, 0, 1, 1], [], []>} : vector<16x64xf32>, vector<64x128xf32>, vector<16x128xf32> -> vector<16x128xf32>
    %c0_27 = arith.constant 0 : index
    %c0_28 = arith.constant 0 : index
    %35 = vector.load %arg11[%c0_27, %c0_28] : memref<1x128xf32, #tpu.memory_space<vmem>>, vector<1x128xf32>
    %36 = vector.broadcast %35 : vector<1x128xf32> to vector<16x128xf32>
    %37 = arith.addf %34, %36 : vector<16x128xf32>
    %c0_29 = arith.constant 0 : index
    %c0_30 = arith.constant 0 : index
    %38 = vector.load %arg12[%c0_29, %c0_30] : memref<16x128xf32, #tpu.memory_space<vmem>>, vector<16x128xf32>
    tpu.vector_store %arg12[%c0_29, %c0_30], %37 {strides = array<i32>} : memref<16x128xf32, #tpu.memory_space<vmem>>, vector<16x128xf32>,
    return
  }
  func.func @transform_0(%arg0: i32) -> (i32, i32) {
    %c0_i32 = arith.constant 0 : i32
    %c0_i32_0 = arith.constant 0 : i32
    return %arg0, %c0_i32 : i32, i32
  }
  func.func @transform_1(%arg0: i32) -> (i32, i32) {
    %c0_i32 = arith.constant 0 : i32
    %c0_i32_0 = arith.constant 0 : i32
    %c0_i32_1 = arith.constant 0 : i32
    return %c0_i32, %c0_i32_0 : i32, i32
  }
  func.func @transform_2(%arg0: i32) -> (i32, i32) {
    %c0_i32 = arith.constant 0 : i32
    %c0_i32_0 = arith.constant 0 : i32
    %c0_i32_1 = arith.constant 0 : i32
    return %c0_i32, %c0_i32_0 : i32, i32
  }
  func.func @transform_3(%arg0: i32) -> (i32, i32) {
    %c0_i32 = arith.constant 0 : i32
    %c0_i32_0 = arith.constant 0 : i32
    %c0_i32_1 = arith.constant 0 : i32
    return %c0_i32, %c0_i32_0 : i32, i32
  }
  func.func @transform_4(%arg0: i32) -> (i32, i32) {
    %c0_i32 = arith.constant 0 : i32
    %c0_i32_0 = arith.constant 0 : i32
    %c0_i32_1 = arith.constant 0 : i32
    return %c0_i32, %c0_i32_0 : i32, i32
  }
  func.func @transform_5(%arg0: i32) -> (i32, i32) {
    %c0_i32 = arith.constant 0 : i32
    %c0_i32_0 = arith.constant 0 : i32
    %c0_i32_1 = arith.constant 0 : i32
    return %c0_i32, %c0_i32_0 : i32, i32
  }
  func.func @transform_6(%arg0: i32) -> (i32, i32) {
    %c0_i32 = arith.constant 0 : i32
    %c0_i32_0 = arith.constant 0 : i32
    %c0_i32_1 = arith.constant 0 : i32
    return %c0_i32, %c0_i32_0 : i32, i32
  }
  func.func @transform_7(%arg0: i32) -> (i32, i32) {
    %c0_i32 = arith.constant 0 : i32
    %c0_i32_0 = arith.constant 0 : i32
    %c0_i32_1 = arith.constant 0 : i32
    return %c0_i32, %c0_i32_0 : i32, i32
  }
  func.func @transform_8(%arg0: i32) -> (i32, i32) {
    %c0_i32 = arith.constant 0 : i32
    %c0_i32_0 = arith.constant 0 : i32
    %c0_i32_1 = arith.constant 0 : i32
    return %c0_i32, %c0_i32_0 : i32, i32
  }
  func.func @transform_9(%arg0: i32) -> (i32, i32) {
    %c0_i32 = arith.constant 0 : i32
    %c0_i32_0 = arith.constant 0 : i32
    %c0_i32_1 = arith.constant 0 : i32
    return %c0_i32, %c0_i32_0 : i32, i32
  }
  func.func @transform_10(%arg0: i32) -> (i32, i32) {
    %c0_i32 = arith.constant 0 : i32
    %c0_i32_0 = arith.constant 0 : i32
    %c0_i32_1 = arith.constant 0 : i32
    return %c0_i32, %c0_i32_0 : i32, i32
  }
  func.func @transform_11(%arg0: i32) -> (i32, i32) {
    %c0_i32 = arith.constant 0 : i32
    %c0_i32_0 = arith.constant 0 : i32
    return %arg0, %c0_i32 : i32, i32
  }
}

</mosaic_0001>

<llo_original>
// kernel: tpu_custom_call.1
$region0: #{tpu_custom_call.1}
  #allocation0 [shape = 'u32[]', space=smem, size = 0x4, offset = 0x4, fixed_abs, tag = 'smem constant byte address 0x4 - core index']
  #allocation1 [shape = 'u32[144,128]{1,0:T(1,128)}', space=vmem, size = 0x12000, scoped, tag = 'internal scratch']
  %s0 = inlined_call_operand.vmem [shape: f32[20,128], index: 0, kind: input, shape index: {}]
  %s1 = inlined_call_operand.vmem [shape: f32[128,64], index: 1, kind: input, shape index: {}]
  %s2 = inlined_call_operand.vmem [shape: f32[1,64], index: 2, kind: input, shape index: {}]
  %s3 = inlined_call_operand.vmem [shape: f32[64,32], index: 3, kind: input, shape index: {}]
  %s4 = inlined_call_operand.vmem [shape: f32[1,32], index: 4, kind: input, shape index: {}]
  %s5 = inlined_call_operand.vmem [shape: f32[32,32], index: 5, kind: input, shape index: {}]
  %s6 = inlined_call_operand.vmem [shape: f32[1,32], index: 6, kind: input, shape index: {}]
  %s7 = inlined_call_operand.vmem [shape: f32[32,64], index: 7, kind: input, shape index: {}]
  %s8 = inlined_call_operand.vmem [shape: f32[1,64], index: 8, kind: input, shape index: {}]
  %s9 = inlined_call_operand.vmem [shape: f32[64,128], index: 9, kind: input, shape index: {}]
  %s10 = inlined_call_operand.vmem [shape: f32[1,128], index: 10, kind: input, shape index: {}]
  %s11 = inlined_call_operand.hbm [shape: f32[20,128], index: 11, kind: output, shape index: {}]
  %s12 = sld [smem:[#allocation0]]
  $region77: #{tpu_custom_call.1} parent=0
    _
  %s14 = ssub.s32 1, %s12
  %s15 = scalar_select 0, %s14, %s12
  $region1: #{tpu_custom_call.1} parent=0
    #allocation2 [shape = 'u8[16384]{0}', space=vmem, size = 0x4000, scoped, tag = 'output window, operand 0']
    #allocation3 [shape = 's32[2]{0}', space=sflag, size = 0x8, scoped, tag = 'scoped memory for tpu_custom_call.1']
    %16 = vsyncpa [#allocation3], 0
    %s17 = scalar_lea.sflag [#allocation3], 1
    %18 = vsyncpa %s17, 0
    loop: start=0, step=1, limit=4
    $region2: #{tpu_custom_call.1} parent=1 // loop_pre_header
      _
    $region3: #{tpu_custom_call.1} parent=1 // loop_header
      %s20 = sphi 0, %s24
      %p21 = scmp.ge.s32.totalorder %s20, 4
      %s30 = sphi 0, %s32
      %s33 = sphi 0, %s30
      %s34 = sphi 0, %s33
      %s50 = sphi 0, %s34
      %s54 = sphi 0, %s54
      %s56 = sphi 0, %s54
      %s57 = sphi 0, %s56
      %s71 = sphi 0, %s57
      %s75 = sphi 0, %s75
      %s77 = sphi 0, %s75
      %s78 = sphi 0, %s77
      %s92 = sphi 0, %s78
      %s96 = sphi 0, %s96
      %s98 = sphi 0, %s96
      %s99 = sphi 0, %s98
      %s113 = sphi 0, %s99
      %s117 = sphi 0, %s117
      %s119 = sphi 0, %s117
      %s120 = sphi 0, %s119
      %s134 = sphi 0, %s120
      %s138 = sphi 0, %s138
      %s140 = sphi 0, %s138
      %s141 = sphi 0, %s140
      %s155 = sphi 0, %s141
      %s159 = sphi 0, %s159
      %s161 = sphi 0, %s159
      %s162 = sphi 0, %s161
      %s176 = sphi 0, %s162
      %s180 = sphi 0, %s180
      %s182 = sphi 0, %s180
      %s183 = sphi 0, %s182
      %s197 = sphi 0, %s183
      %s201 = sphi 0, %s201
      %s203 = sphi 0, %s201
      %s204 = sphi 0, %s203
      %s218 = sphi 0, %s204
      %s222 = sphi 0, %s222
      %s224 = sphi 0, %s222
      %s225 = sphi 0, %s224
      %s239 = sphi 0, %s225
      %s243 = sphi 0, %s243
      %s245 = sphi 0, %s243
      %s246 = sphi 0, %s245
      %s260 = sphi 0, %s246
      %s266 = sphi 0, %s268
      %s269 = sphi 0, %s266
      %s270 = sphi 0, %s269
      %s286 = sphi 0, %s270
    $region4: #{tpu_custom_call.1} parent=1 // loop_header_branch
      %23 = sbr.rel (%p21) target = $region8
    $region5: #{tpu_custom_call.1} parent=1 // loop_body
      %s25 = ssub.s32 %s20, 1
      %s26 = ssub.s32 %s20, 2
      %s27 = sadd.s32 %s20, 1
      %s28 = ssub.s32 %s20, %s27
      %p29 = scmp.eq.s32.totalorder %s28, 0
      %s31 = sadd.s32 %s30, 1
      %s32 = scalar_select %p29, %s30, %s31
      %p35 = pneg %p29
      %p36 = scmp.eq.s32.totalorder %s20, 1
      %p37 = por %p35, %p36
      %p38 = scmp.ne.s32.totalorder %s30, %s33
      %p39 = scmp.eq.s32.totalorder %s20, 0
      %p40 = por %p38, %p39
      %p41 = scmp.ne.s32.totalorder %s30, %s33
      %p42 = scmp.eq.s32.totalorder %s25, 1
      %p43 = por %p41, %p42
      %p44 = scmp.ne.s32.totalorder %s33, %s34
      %p45 = scmp.eq.s32.totalorder %s25, 0
      %p46 = por %p44, %p45
      %p47 = scmp.ne.s32.totalorder %s33, %s34
      %p48 = scmp.eq.s32.totalorder %s26, 1
      %p49 = por %p47, %p48
      %p51 = scmp.ne.s32.totalorder %s34, %s50
      %p52 = scmp.eq.s32.totalorder %s26, 0
      %p53 = por %p51, %p52
      %s55 = sadd.s32 %s54, 1
      %p58 = scmp.eq.s32.totalorder %s20, 1
      %p59 = scmp.ne.s32.totalorder %s54, %s56
      %p60 = scmp.eq.s32.totalorder %s20, 0
      %p61 = por %p59, %p60
      %p62 = scmp.ne.s32.totalorder %s54, %s56
      %p63 = scmp.eq.s32.totalorder %s25, 1
      %p64 = por %p62, %p63
      %p65 = scmp.ne.s32.totalorder %s56, %s57
      %p66 = scmp.eq.s32.totalorder %s25, 0
      %p67 = por %p65, %p66
      %p68 = scmp.ne.s32.totalorder %s56, %s57
      %p69 = scmp.eq.s32.totalorder %s26, 1
      %p70 = por %p68, %p69
      %p72 = scmp.ne.s32.totalorder %s57, %s71
      %p73 = scmp.eq.s32.totalorder %s26, 0
      %p74 = por %p72, %p73
      %s76 = sadd.s32 %s75, 1
      %p79 = scmp.eq.s32.totalorder %s20, 1
      %p80 = scmp.ne.s32.totalorder %s75, %s77
      %p81 = scmp.eq.s32.totalorder %s20, 0
      %p82 = por %p80, %p81
      %p83 = scmp.ne.s32.totalorder %s75, %s77
      %p84 = scmp.eq.s32.totalorder %s25, 1
      %p85 = por %p83, %p84
      %p86 = scmp.ne.s32.totalorder %s77, %s78
      %p87 = scmp.eq.s32.totalorder %s25, 0
      %p88 = por %p86, %p87
      %p89 = scmp.ne.s32.totalorder %s77, %s78
      %p90 = scmp.eq.s32.totalorder %s26, 1
      %p91 = por %p89, %p90
      %p93 = scmp.ne.s32.totalorder %s78, %s92
      %p94 = scmp.eq.s32.totalorder %s26, 0
      %p95 = por %p93, %p94
      %s97 = sadd.s32 %s96, 1
      %p100 = scmp.eq.s32.totalorder %s20, 1
      %p101 = scmp.ne.s32.totalorder %s96, %s98
      %p102 = scmp.eq.s32.totalorder %s20, 0
      %p103 = por %p101, %p102
      %p104 = scmp.ne.s32.totalorder %s96, %s98
      %p105 = scmp.eq.s32.totalorder %s25, 1
      %p106 = por %p104, %p105
      %p107 = scmp.ne.s32.totalorder %s98, %s99
      %p108 = scmp.eq.s32.totalorder %s25, 0
      %p109 = por %p107, %p108
      %p110 = scmp.ne.s32.totalorder %s98, %s99
      %p111 = scmp.eq.s32.totalorder %s26, 1
      %p112 = por %p110, %p111
      %p114 = scmp.ne.s32.totalorder %s99, %s113
      %p115 = scmp.eq.s32.totalorder %s26, 0
      %p116 = por %p114, %p115
      %s118 = sadd.s32 %s117, 1
      %p121 = scmp.eq.s32.totalorder %s20, 1
      %p122 = scmp.ne.s32.totalorder %s117, %s119
      %p123 = scmp.eq.s32.totalorder %s20, 0
      %p124 = por %p122, %p123
      %p125 = scmp.ne.s32.totalorder %s117, %s119
      %p126 = scmp.eq.s32.totalorder %s25, 1
      %p127 = por %p125, %p126
      %p128 = scmp.ne.s32.totalorder %s119, %s120
      %p129 = scmp.eq.s32.totalorder %s25, 0
      %p130 = por %p128, %p129
      %p131 = scmp.ne.s32.totalorder %s119, %s120
      %p132 = scmp.eq.s32.totalorder %s26, 1
      %p133 = por %p131, %p132
      %p135 = scmp.ne.s32.totalorder %s120, %s134
      %p136 = scmp.eq.s32.totalorder %s26, 0
      %p137 = por %p135, %p136
      %s139 = sadd.s32 %s138, 1
      %p142 = scmp.eq.s32.totalorder %s20, 1
      %p143 = scmp.ne.s32.totalorder %s138, %s140
      %p144 = scmp.eq.s32.totalorder %s20, 0
      %p145 = por %p143, %p144
      %p146 = scmp.ne.s32.totalorder %s138, %s140
      %p147 = scmp.eq.s32.totalorder %s25, 1
      %p148 = por %p146, %p147
      %p149 = scmp.ne.s32.totalorder %s140, %s141
      %p150 = scmp.eq.s32.totalorder %s25, 0
      %p151 = por %p149, %p150
      %p152 = scmp.ne.s32.totalorder %s140, %s141
      %p153 = scmp.eq.s32.totalorder %s26, 1
      %p154 = por %p152, %p153
      %p156 = scmp.ne.s32.totalorder %s141, %s155
      %p157 = scmp.eq.s32.totalorder %s26, 0
      %p158 = por %p156, %p157
      %s160 = sadd.s32 %s159, 1
      %p163 = scmp.eq.s32.totalorder %s20, 1
      %p164 = scmp.ne.s32.totalorder %s159, %s161
      %p165 = scmp.eq.s32.totalorder %s20, 0
      %p166 = por %p164, %p165
      %p167 = scmp.ne.s32.totalorder %s159, %s161
      %p168 = scmp.eq.s32.totalorder %s25, 1
      %p169 = por %p167, %p168
      %p170 = scmp.ne.s32.totalorder %s161, %s162
      %p171 = scmp.eq.s32.totalorder %s25, 0
      %p172 = por %p170, %p171
      %p173 = scmp.ne.s32.totalorder %s161, %s162
      %p174 = scmp.eq.s32.totalorder %s26, 1
      %p175 = por %p173, %p174
      %p177 = scmp.ne.s32.totalorder %s162, %s176
      %p178 = scmp.eq.s32.totalorder %s26, 0
      %p179 = por %p177, %p178
      %s181 = sadd.s32 %s180, 1
      %p184 = scmp.eq.s32.totalorder %s20, 1
      %p185 = scmp.ne.s32.totalorder %s180, %s182
      %p186 = scmp.eq.s32.totalorder %s20, 0
      %p187 = por %p185, %p186
      %p188 = scmp.ne.s32.totalorder %s180, %s182
      %p189 = scmp.eq.s32.totalorder %s25, 1
      %p190 = por %p188, %p189
      %p191 = scmp.ne.s32.totalorder %s182, %s183
      %p192 = scmp.eq.s32.totalorder %s25, 0
      %p193 = por %p191, %p192
      %p194 = scmp.ne.s32.totalorder %s182, %s183
      %p195 = scmp.eq.s32.totalorder %s26, 1
      %p196 = por %p194, %p195
      %p198 = scmp.ne.s32.totalorder %s183, %s197
      %p199 = scmp.eq.s32.totalorder %s26, 0
      %p200 = por %p198, %p199
      %s202 = sadd.s32 %s201, 1
      %p205 = scmp.eq.s32.totalorder %s20, 1
      %p206 = scmp.ne.s32.totalorder %s201, %s203
      %p207 = scmp.eq.s32.totalorder %s20, 0
      %p208 = por %p206, %p207
      %p209 = scmp.ne.s32.totalorder %s201, %s203
      %p210 = scmp.eq.s32.totalorder %s25, 1
      %p211 = por %p209, %p210
      %p212 = scmp.ne.s32.totalorder %s203, %s204
      %p213 = scmp.eq.s32.totalorder %s25, 0
      %p214 = por %p212, %p213
      %p215 = scmp.ne.s32.totalorder %s203, %s204
      %p216 = scmp.eq.s32.totalorder %s26, 1
      %p217 = por %p215, %p216
      %p219 = scmp.ne.s32.totalorder %s204, %s218
      %p220 = scmp.eq.s32.totalorder %s26, 0
      %p221 = por %p219, %p220
      %s223 = sadd.s32 %s222, 1
      %p226 = scmp.eq.s32.totalorder %s20, 1
      %p227 = scmp.ne.s32.totalorder %s222, %s224
      %p228 = scmp.eq.s32.totalorder %s20, 0
      %p229 = por %p227, %p228
      %p230 = scmp.ne.s32.totalorder %s222, %s224
      %p231 = scmp.eq.s32.totalorder %s25, 1
      %p232 = por %p230, %p231
      %p233 = scmp.ne.s32.totalorder %s224, %s225
      %p234 = scmp.eq.s32.totalorder %s25, 0
      %p235 = por %p233, %p234
      %p236 = scmp.ne.s32.totalorder %s224, %s225
      %p237 = scmp.eq.s32.totalorder %s26, 1
      %p238 = por %p236, %p237
      %p240 = scmp.ne.s32.totalorder %s225, %s239
      %p241 = scmp.eq.s32.totalorder %s26, 0
      %p242 = por %p240, %p241
      %s244 = sadd.s32 %s243, 1
      %p247 = scmp.eq.s32.totalorder %s20, 1
      %p248 = scmp.ne.s32.totalorder %s243, %s245
      %p249 = scmp.eq.s32.totalorder %s20, 0
      %p250 = por %p248, %p249
      %p251 = scmp.ne.s32.totalorder %s243, %s245
      %p252 = scmp.eq.s32.totalorder %s25, 1
      %p253 = por %p251, %p252
      %p254 = scmp.ne.s32.totalorder %s245, %s246
      %p255 = scmp.eq.s32.totalorder %s25, 0
      %p256 = por %p254, %p255
      %p257 = scmp.ne.s32.totalorder %s245, %s246
      %p258 = scmp.eq.s32.totalorder %s26, 1
      %p259 = por %p257, %p258
      %p261 = scmp.ne.s32.totalorder %s246, %s260
      %p262 = scmp.eq.s32.totalorder %s26, 0
      %p263 = por %p261, %p262
      %s264 = ssub.s32 %s20, %s27
      %p265 = scmp.eq.s32.totalorder %s264, 0
      %s267 = sadd.s32 %s266, 1
      %s268 = scalar_select %p265, %s266, %s267
      %p271 = pneg %p265
      %p272 = scmp.eq.s32.totalorder %s20, 1
      %p273 = por %p271, %p272
      %p274 = scmp.ne.s32.totalorder %s266, %s269
      %p275 = scmp.eq.s32.totalorder %s20, 0
      %p276 = por %p274, %p275
      %p277 = scmp.ne.s32.totalorder %s266, %s269
      %p278 = scmp.eq.s32.totalorder %s25, 1
      %p279 = por %p277, %p278
      %p280 = scmp.ne.s32.totalorder %s269, %s270
      %p281 = scmp.eq.s32.totalorder %s25, 0
      %p282 = por %p280, %p281
      %p283 = scmp.ne.s32.totalorder %s269, %s270
      %p284 = scmp.eq.s32.totalorder %s26, 1
      %p285 = por %p283, %p284
      %p287 = scmp.ne.s32.totalorder %s270, %s286
      %p288 = scmp.eq.s32.totalorder %s26, 0
      %p289 = por %p287, %p288
      %p290 = scmp.le.s32.totalorder 1, %s20
      %p291 = scmp.lt.s32.totalorder %s20, 3
      %p292 = pnand %p290, %p291
      %p293 = pneg %p292
      // Predicated region
      $region9: #{tpu_custom_call.1} parent=5 // pred_check
        _
      $region10: #{tpu_custom_call.1} parent=5 // pred_check_branch
        %295 = sbr.rel (%p292) target = $region12
      $region11: #{tpu_custom_call.1} parent=5 // pred_region
        %s296 = ssub.s32 %s20, 1
        // Predicated region
        $region13: #{tpu_custom_call.1} parent=11 // pred_check
          %p297 = pneg %p67
        $region14: #{tpu_custom_call.1} parent=11 // pred_check_branch
          %299 = sbr.rel (%p297) target = $region16
        $region15: #{tpu_custom_call.1} parent=11 // pred_region
          _
        $region16: #{tpu_custom_call.1} parent=11 // pred_fallthru
          _
        // Predicated region
        $region17: #{tpu_custom_call.1} parent=11 // pred_check
          %p300 = pneg %p88
        $region18: #{tpu_custom_call.1} parent=11 // pred_check_branch
          %302 = sbr.rel (%p300) target = $region20
        $region19: #{tpu_custom_call.1} parent=11 // pred_region
          _
        $region20: #{tpu_custom_call.1} parent=11 // pred_fallthru
          _
        // Predicated region
        $region21: #{tpu_custom_call.1} parent=11 // pred_check
          %p303 = pneg %p109
        $region22: #{tpu_custom_call.1} parent=11 // pred_check_branch
          %305 = sbr.rel (%p303) target = $region24
        $region23: #{tpu_custom_call.1} parent=11 // pred_region
          _
        $region24: #{tpu_custom_call.1} parent=11 // pred_fallthru
          _
        // Predicated region
        $region25: #{tpu_custom_call.1} parent=11 // pred_check
          %p306 = pneg %p130
        $region26: #{tpu_custom_call.1} parent=11 // pred_check_branch
          %308 = sbr.rel (%p306) target = $region28
        $region27: #{tpu_custom_call.1} parent=11 // pred_region
          _
        $region28: #{tpu_custom_call.1} parent=11 // pred_fallthru
          _
        // Predicated region
        $region29: #{tpu_custom_call.1} parent=11 // pred_check
          %p309 = pneg %p151
        $region30: #{tpu_custom_call.1} parent=11 // pred_check_branch
          %311 = sbr.rel (%p309) target = $region32
        $region31: #{tpu_custom_call.1} parent=11 // pred_region
          _
        $region32: #{tpu_custom_call.1} parent=11 // pred_fallthru
          _
        // Predicated region
        $region33: #{tpu_custom_call.1} parent=11 // pred_check
          %p312 = pneg %p172
        $region34: #{tpu_custom_call.1} parent=11 // pred_check_branch
          %314 = sbr.rel (%p312) target = $region36
        $region35: #{tpu_custom_call.1} parent=11 // pred_region
          _
        $region36: #{tpu_custom_call.1} parent=11 // pred_fallthru
          _
        // Predicated region
        $region37: #{tpu_custom_call.1} parent=11 // pred_check
          %p315 = pneg %p193
        $region38: #{tpu_custom_call.1} parent=11 // pred_check_branch
          %317 = sbr.rel (%p315) target = $region40
        $region39: #{tpu_custom_call.1} parent=11 // pred_region
          _
        $region40: #{tpu_custom_call.1} parent=11 // pred_fallthru
          _
        // Predicated region
        $region41: #{tpu_custom_call.1} parent=11 // pred_check
          %p318 = pneg %p214
        $region42: #{tpu_custom_call.1} parent=11 // pred_check_branch
          %320 = sbr.rel (%p318) target = $region44
        $region43: #{tpu_custom_call.1} parent=11 // pred_region
          _
        $region44: #{tpu_custom_call.1} parent=11 // pred_fallthru
          _
        // Predicated region
        $region45: #{tpu_custom_call.1} parent=11 // pred_check
          %p321 = pneg %p235
        $region46: #{tpu_custom_call.1} parent=11 // pred_check_branch
          %323 = sbr.rel (%p321) target = $region48
        $region47: #{tpu_custom_call.1} parent=11 // pred_region
          _
        $region48: #{tpu_custom_call.1} parent=11 // pred_fallthru
          _
        // Predicated region
        $region49: #{tpu_custom_call.1} parent=11 // pred_check
          %p324 = pneg %p256
        $region50: #{tpu_custom_call.1} parent=11 // pred_check_branch
          %326 = sbr.rel (%p324) target = $region52
        $region51: #{tpu_custom_call.1} parent=11 // pred_region
          _
        $region52: #{tpu_custom_call.1} parent=11 // pred_fallthru
          _
      $region12: #{tpu_custom_call.1} parent=5 // pred_fallthru
        _
      %p327 = scmp.lt.s32.totalorder %s20, 2
      // Predicated region
      $region53: #{tpu_custom_call.1} parent=5 // pred_check
        %p328 = pneg %p327
      $region54: #{tpu_custom_call.1} parent=5 // pred_check_branch
        %330 = sbr.rel (%p328) target = $region56
      $region55: #{tpu_custom_call.1} parent=5 // pred_region
        // Predicated region
        $region57: #{tpu_custom_call.1} parent=55 // pred_check
          %p331 = pneg %p40
        $region58: #{tpu_custom_call.1} parent=55 // pred_check_branch
          %333 = sbr.rel (%p331) target = $region60
        $region59: #{tpu_custom_call.1} parent=55 // pred_region
          %s334 = smul.u32 2, %s20
          %s335 = ssub.s32 3, %s334
          %p336 = scmp.lt.s32.totalorder %s335, 2
          %s337 = scalar_select %p336, %s335, 2
          %s338 = smul.u32 128, %s337
          %p339 = scmp.lt.s32.totalorder %s334, 2
          %s340 = scalar_select %p339, %s334, 2
          %s341 = smul.addr %s340, 8
          %s342 = scalar_lea.vmem %s0, %s341
          %s343 = smul.u32 2, %s20
          %s344 = ssub.s32 3, %s343
          %p345 = scmp.lt.s32.totalorder %s344, 2
          %s346 = scalar_select %p345, %s344, 2
          %s347 = smul.u32 128, %s346
        $region60: #{tpu_custom_call.1} parent=55 // pred_fallthru
          _
      $region56: #{tpu_custom_call.1} parent=5 // pred_fallthru
        _
      %p348 = scmp.le.s32.totalorder 1, %s20
      %p349 = scmp.lt.s32.totalorder %s20, 3
      %p350 = pnand %p348, %p349
      %p351 = pneg %p350
      // Predicated region
      $region61: #{tpu_custom_call.1} parent=5 // pred_check
        _
      $region62: #{tpu_custom_call.1} parent=5 // pred_check_branch
        %353 = sbr.rel (%p350) target = $region64
      $region63: #{tpu_custom_call.1} parent=5 // pred_region
        %s354 = ssub.s32 %s20, 1
        %s355 = smul.u32 2, %s25
        %s356 = ssub.s32 3, %s355
        %p357 = scmp.lt.s32.totalorder %s356, 2
        %s358 = scalar_select %p357, %s356, 2
        %s359 = smul.u32 128, %s358
        %p360 = scmp.lt.s32.totalorder %s355, 2
        %s361 = scalar_select %p360, %s355, 2
        %s362 = smul.addr %s361, 8
        %s363 = scalar_lea.vmem %s0, %s362
        %p364 = pneg %p46
        %p365 = pneg %p43
        %p366 = pneg %p67
        %p367 = pneg %p64
        %p368 = pneg %p88
        %p369 = pneg %p85
        %p370 = pneg %p109
        %p371 = pneg %p106
        %p372 = pneg %p130
        %p373 = pneg %p127
        %p374 = pneg %p151
        %p375 = pneg %p148
        %p376 = pneg %p172
        %p377 = pneg %p169
        %p378 = pneg %p193
        %p379 = pneg %p190
        %p380 = pneg %p214
        %p381 = pneg %p211
        %p382 = pneg %p235
        %p383 = pneg %p232
        %p384 = pneg %p256
        %p385 = pneg %p253
        %p386 = pneg %p282
        %p387 = pneg %p279
        %s388 = sand.u32 %s269, 1
        %s389 = scalar_lea.sflag [#allocation3], %s388
        %s390 = sand.u32 %s269, 1
        %s391 = smul.addr %s390, 16
        %s392 = scalar_lea.vmem [#allocation2], %s391
        %s393 = smul.u32 2, %s25
        %s394 = ssub.s32 3, %s393
        %p395 = scmp.lt.s32.totalorder %s394, 2
        %s396 = scalar_select %p395, %s394, 2
        %s397 = smul.u32 128, %s396
        %p398 = scmp.lt.s32.totalorder %s393, 2
        %s399 = scalar_select %p398, %s393, 2
        %s400 = smul.addr %s399, 8
        %s401 = scalar_lea.vmem %s0, %s400
        %s402 = smul.u32 2, %s25
        %s403 = ssub.s32 3, %s402
        %p404 = scmp.lt.s32.totalorder %s403, 2
        %s405 = scalar_select %p404, %s403, 2
        %s406 = smul.u32 128, %s405
        %s407 = smul.u32 2, %s25
        %s408 = ssub.s32 3, %s407
        %p409 = scmp.lt.s32.totalorder %s408, 2
        %s410 = scalar_select %p409, %s408, 2
        %s411 = smul.u32 128, %s410
        %v412 = vld [vmem:[%s401] sm:$0xff]
        %v413 = vld [vmem:[%s401 + $0x8] sm:$0xff]
        %v414 = vld [vmem:[%s1] sm:$0xff]
        %v415 = vld [vmem:[%s1 + $0x8] sm:$0xff]
        %v416 = vld [vmem:[%s1 + $0x10] sm:$0xff]
        %v417 = vld [vmem:[%s1 + $0x18] sm:$0xff]
        %v418 = vld [vmem:[%s1 + $0x20] sm:$0xff]
        %v419 = vld [vmem:[%s1 + $0x28] sm:$0xff]
        %v420 = vld [vmem:[%s1 + $0x30] sm:$0xff]
        %v421 = vld [vmem:[%s1 + $0x38] sm:$0xff]
        %v422 = vld [vmem:[%s1 + $0x40] sm:$0xff]
        %v423 = vld [vmem:[%s1 + $0x48] sm:$0xff]
        %v424 = vld [vmem:[%s1 + $0x50] sm:$0xff]
        %v425 = vld [vmem:[%s1 + $0x58] sm:$0xff]
        %v426 = vld [vmem:[%s1 + $0x60] sm:$0xff]
        %v427 = vld [vmem:[%s1 + $0x68] sm:$0xff]
        %v428 = vld [vmem:[%s1 + $0x70] sm:$0xff]
        %v429 = vld [vmem:[%s1 + $0x78] sm:$0xff]
        %v430 = vld [vmem:[%s2] sm:$0x1]
        %v432 = vlaneseq
        %v433 = vshrl.u32 %v432, 7
        %v434 = vsub.s32 0, %v433
        %v435 = vrot.slane %v430, %v434
        %437 = vmatprep.subr.mxu0 0.0
        %438 = vmatpush1.msra.mxu0 %v414
        %439 = vmatprep.subr.mxu0 0.0
        %440 = vmatpush1.msra.mxu0 %v415
        %441 = vmatprep.subr.mxu0 0.0
        %442 = vmatpush1.msra.mxu0 %v416
        %443 = vmatprep.subr.mxu0 0.0
        %444 = vmatpush1.msra.mxu0 %v417
        %445 = vmatprep.subr.mxu0 0.0
        %446 = vmatpush1.msra.mxu0 %v418
        %447 = vmatprep.subr.mxu0 0.0
        %448 = vmatpush1.msra.mxu0 %v419
        %449 = vmatprep.subr.mxu0 0.0
        %450 = vmatpush1.msra.mxu0 %v420
        %451 = vmatprep.subr.mxu0 0.0
        %452 = vmatpush1.msra.mxu0 %v421
        %453 = vmatprep.subr.mxu0 0.0
        %454 = vmatpush1.msra.mxu0 %v422
        %455 = vmatprep.subr.mxu0 0.0
        %456 = vmatpush1.msra.mxu0 %v423
        %457 = vmatprep.subr.mxu0 0.0
        %458 = vmatpush1.msra.mxu0 %v424
        %459 = vmatprep.subr.mxu0 0.0
        %460 = vmatpush1.msra.mxu0 %v425
        %461 = vmatprep.subr.mxu0 0.0
        %462 = vmatpush1.msra.mxu0 %v426
        %463 = vmatprep.subr.mxu0 0.0
        %464 = vmatpush1.msra.mxu0 %v427
        %465 = vmatprep.subr.mxu0 0.0
        %466 = vmatpush1.msra.mxu0 %v428
        %467 = vmatprep.subr.mxu0 0.0
        %468 = vmatpush1.msra.mxu0 %v429
        %469 = vmatprep.subr.mxu0 0.0
        %470 = vmatpush1.msra.mxu0 0.0
        %471 = vmatprep.subr.mxu0 0.0
        %472 = vmatpush1.msra.mxu0 0.0
        %473 = vmatprep.subr.mxu0 0.0
        %474 = vmatpush1.msra.mxu0 0.0
        %475 = vmatprep.subr.mxu0 0.0
        %476 = vmatpush1.msra.mxu0 0.0
        %477 = vmatprep.subr.mxu0 0.0
        %478 = vmatpush1.msra.mxu0 0.0
        %479 = vmatprep.subr.mxu0 0.0
        %480 = vmatpush1.msra.mxu0 0.0
        %481 = vmatprep.subr.mxu0 0.0
        %482 = vmatpush1.msra.mxu0 0.0
        %483 = vmatprep.subr.mxu0 0.0
        %484 = vmatpush1.msra.mxu0 0.0
        %485 = vmatprep.subr.mxu0 0.0
        %486 = vmatpush1.msra.mxu0 0.0
        %487 = vmatprep.subr.mxu0 0.0
        %488 = vmatpush1.msra.mxu0 0.0
        %489 = vmatprep.subr.mxu0 0.0
        %490 = vmatpush1.msra.mxu0 0.0
        %491 = vmatprep.subr.mxu0 0.0
        %492 = vmatpush1.msra.mxu0 0.0
        %493 = vmatprep.subr.mxu0 0.0
        %494 = vmatpush1.msra.mxu0 0.0
        %495 = vmatprep.subr.mxu0 0.0
        %496 = vmatpush1.msra.mxu0 0.0
        %497 = vmatprep.subr.mxu0 0.0
        %498 = vmatpush1.msra.mxu0 0.0
        %499 = vmatprep.subr.mxu0 0.0
        %500 = vmatpush1.msra.mxu0 0.0
        %501 = vmatprep.mubr.f32.mxu0 0.0
        %502 = vmatmul.mubr.f32.gmra.mrb[0].mxu0 %v412
        %v503 = vpop.f32.mrb[0].mxu0
        %v504 = vadd.f32 %v435, %v503
        %v505 = vpop.f32.mrb[0].mxu0
        %506 = vmatprep.mubr.f32.mxu0 0.0
        %507 = vmatmul.mubr.f32.gmra.mrb[0].mxu0 %v413
        %v508 = vpop.f32.mrb[0].mxu0
        %v509 = vadd.f32 %v435, %v508
        %v510 = vpop.f32.mrb[0].mxu0
        %511 = vdwg.mxu0
        %v512 = vmul.f32 %v504, 0.2
        %v513 = vmul.f32 %v509, 0.2
        %v514 = vmax.f32 %v504, %v512
        %v515 = vmax.f32 %v509, %v513
        %v516 = vld [vmem:[%s3] sm:$0xff]
        %v517 = vld [vmem:[%s3 + $0x8] sm:$0xff]
        %v518 = vld [vmem:[%s3 + $0x10] sm:$0xff]
        %v519 = vld [vmem:[%s3 + $0x18] sm:$0xff]
        %v520 = vld [vmem:[%s3 + $0x20] sm:$0xff]
        %v521 = vld [vmem:[%s3 + $0x28] sm:$0xff]
        %v522 = vld [vmem:[%s3 + $0x30] sm:$0xff]
        %v523 = vld [vmem:[%s3 + $0x38] sm:$0xff]
        %v524 = vld [vmem:[%s4] sm:$0x1]
        %v526 = vlaneseq
        %v527 = vshrl.u32 %v526, 7
        %v528 = vsub.s32 0, %v527
        %v529 = vrot.slane %v524, %v528
        %vm531 = vcmask 523264
        %v533 = vsel %vm531, %v514, 0
        %v536 = vsel %vm531, %v515, 0
        %538 = vmatprep.subr.mxu0 0.0
        %539 = vmatpush1.msra.mxu0 %v516
        %540 = vmatprep.subr.mxu0 0.0
        %541 = vmatpush1.msra.mxu0 %v517
        %542 = vmatprep.subr.mxu0 0.0
        %543 = vmatpush1.msra.mxu0 %v518
        %544 = vmatprep.subr.mxu0 0.0
        %545 = vmatpush1.msra.mxu0 %v519
        %546 = vmatprep.subr.mxu0 0.0
        %547 = vmatpush1.msra.mxu0 %v520
        %548 = vmatprep.subr.mxu0 0.0
        %549 = vmatpush1.msra.mxu0 %v521
        %550 = vmatprep.subr.mxu0 0.0
        %551 = vmatpush1.msra.mxu0 %v522
        %552 = vmatprep.subr.mxu0 0.0
        %553 = vmatpush1.msra.mxu0 %v523
        %554 = vmatprep.subr.mxu0 0.0
        %555 = vmatpush1.msra.mxu0 0.0
        %556 = vmatprep.subr.mxu0 0.0
        %557 = vmatpush1.msra.mxu0 0.0
        %558 = vmatprep.subr.mxu0 0.0
        %559 = vmatpush1.msra.mxu0 0.0
        %560 = vmatprep.subr.mxu0 0.0
        %561 = vmatpush1.msra.mxu0 0.0
        %562 = vmatprep.subr.mxu0 0.0
        %563 = vmatpush1.msra.mxu0 0.0
        %564 = vmatprep.subr.mxu0 0.0
        %565 = vmatpush1.msra.mxu0 0.0
        %566 = vmatprep.subr.mxu0 0.0
        %567 = vmatpush1.msra.mxu0 0.0
        %568 = vmatprep.subr.mxu0 0.0
        %569 = vmatpush1.msra.mxu0 0.0
        %570 = vmatprep.subr.mxu0 0.0
        %571 = vmatpush1.msra.mxu0 0.0
        %572 = vmatprep.subr.mxu0 0.0
        %573 = vmatpush1.msra.mxu0 0.0
        %574 = vmatprep.subr.mxu0 0.0
        %575 = vmatpush1.msra.mxu0 0.0
        %576 = vmatprep.subr.mxu0 0.0
        %577 = vmatpush1.msra.mxu0 0.0
        %578 = vmatprep.subr.mxu0 0.0
        %579 = vmatpush1.msra.mxu0 0.0
        %580 = vmatprep.subr.mxu0 0.0
        %581 = vmatpush1.msra.mxu0 0.0
        %582 = vmatprep.subr.mxu0 0.0
        %583 = vmatpush1.msra.mxu0 0.0
        %584 = vmatprep.subr.mxu0 0.0
        %585 = vmatpush1.msra.mxu0 0.0
        %586 = vmatprep.subr.mxu0 0.0
        %587 = vmatpush1.msra.mxu0 0.0
        %588 = vmatprep.subr.mxu0 0.0
        %589 = vmatpush1.msra.mxu0 0.0
        %590 = vmatprep.subr.mxu0 0.0
        %591 = vmatpush1.msra.mxu0 0.0
        %592 = vmatprep.subr.mxu0 0.0
        %593 = vmatpush1.msra.mxu0 0.0
        %594 = vmatprep.subr.mxu0 0.0
        %595 = vmatpush1.msra.mxu0 0.0
        %596 = vmatprep.subr.mxu0 0.0
        %597 = vmatpush1.msra.mxu0 0.0
        %598 = vmatprep.subr.mxu0 0.0
        %599 = vmatpush1.msra.mxu0 0.0
        %600 = vmatprep.subr.mxu0 0.0
        %601 = vmatpush1.msra.mxu0 0.0
        %602 = vmatprep.mubr.f32.mxu0 0.0
        %603 = vmatmul.mubr.f32.gmra.mrb[0].mxu0 %v533
        %v604 = vpop.f32.mrb[0].mxu0
        %v605 = vadd.f32 %v529, %v604
        %v606 = vpop.f32.mrb[0].mxu0
        %607 = vmatprep.mubr.f32.mxu0 0.0
        %608 = vmatmul.mubr.f32.gmra.mrb[0].mxu0 %v536
        %v609 = vpop.f32.mrb[0].mxu0
        %v610 = vadd.f32 %v529, %v609
        %v611 = vpop.f32.mrb[0].mxu0
        %612 = vdwg.mxu0
        %v613 = vmul.f32 %v605, 0.2
        %v614 = vmul.f32 %v610, 0.2
        %v615 = vmax.f32 %v605, %v613
        %v616 = vmax.f32 %v610, %v614
        %v617 = vld [vmem:[%s5] sm:$0xff]
        %v618 = vld [vmem:[%s5 + $0x8] sm:$0xff]
        %v619 = vld [vmem:[%s5 + $0x10] sm:$0xff]
        %v620 = vld [vmem:[%s5 + $0x18] sm:$0xff]
        %v621 = vld [vmem:[%s6] sm:$0x1]
        %v623 = vlaneseq
        %v624 = vshrl.u32 %v623, 7
        %v625 = vsub.s32 0, %v624
        %v626 = vrot.slane %v621, %v625
        %vm628 = vcmask 261120
        %v630 = vsel %vm628, %v615, 0
        %v633 = vsel %vm628, %v616, 0
        %635 = vmatprep.subr.mxu0 0.0
        %636 = vmatpush1.msra.mxu0 %v617
        %637 = vmatprep.subr.mxu0 0.0
        %638 = vmatpush1.msra.mxu0 %v618
        %639 = vmatprep.subr.mxu0 0.0
        %640 = vmatpush1.msra.mxu0 %v619
        %641 = vmatprep.subr.mxu0 0.0
        %642 = vmatpush1.msra.mxu0 %v620
        %643 = vmatprep.subr.mxu0 0.0
        %644 = vmatpush1.msra.mxu0 0.0
        %645 = vmatprep.subr.mxu0 0.0
        %646 = vmatpush1.msra.mxu0 0.0
        %647 = vmatprep.subr.mxu0 0.0
        %648 = vmatpush1.msra.mxu0 0.0
        %649 = vmatprep.subr.mxu0 0.0
        %650 = vmatpush1.msra.mxu0 0.0
        %651 = vmatprep.subr.mxu0 0.0
        %652 = vmatpush1.msra.mxu0 0.0
        %653 = vmatprep.subr.mxu0 0.0
        %654 = vmatpush1.msra.mxu0 0.0
        %655 = vmatprep.subr.mxu0 0.0
        %656 = vmatpush1.msra.mxu0 0.0
        %657 = vmatprep.subr.mxu0 0.0
        %658 = vmatpush1.msra.mxu0 0.0
        %659 = vmatprep.subr.mxu0 0.0
        %660 = vmatpush1.msra.mxu0 0.0
        %661 = vmatprep.subr.mxu0 0.0
        %662 = vmatpush1.msra.mxu0 0.0
        %663 = vmatprep.subr.mxu0 0.0
        %664 = vmatpush1.msra.mxu0 0.0
        %665 = vmatprep.subr.mxu0 0.0
        %666 = vmatpush1.msra.mxu0 0.0
        %667 = vmatprep.subr.mxu0 0.0
        %668 = vmatpush1.msra.mxu0 0.0
        %669 = vmatprep.subr.mxu0 0.0
        %670 = vmatpush1.msra.mxu0 0.0
        %671 = vmatprep.subr.mxu0 0.0
        %672 = vmatpush1.msra.mxu0 0.0
        %673 = vmatprep.subr.mxu0 0.0
        %674 = vmatpush1.msra.mxu0 0.0
        %675 = vmatprep.subr.mxu0 0.0
        %676 = vmatpush1.msra.mxu0 0.0
        %677 = vmatprep.subr.mxu0 0.0
        %678 = vmatpush1.msra.mxu0 0.0
        %679 = vmatprep.subr.mxu0 0.0
        %680 = vmatpush1.msra.mxu0 0.0
        %681 = vmatprep.subr.mxu0 0.0
        %682 = vmatpush1.msra.mxu0 0.0
        %683 = vmatprep.subr.mxu0 0.0
        %684 = vmatpush1.msra.mxu0 0.0
        %685 = vmatprep.subr.mxu0 0.0
        %686 = vmatpush1.msra.mxu0 0.0
        %687 = vmatprep.subr.mxu0 0.0
        %688 = vmatpush1.msra.mxu0 0.0
        %689 = vmatprep.subr.mxu0 0.0
        %690 = vmatpush1.msra.mxu0 0.0
        %691 = vmatprep.subr.mxu0 0.0
        %692 = vmatpush1.msra.mxu0 0.0
        %693 = vmatprep.subr.mxu0 0.0
        %694 = vmatpush1.msra.mxu0 0.0
        %695 = vmatprep.subr.mxu0 0.0
        %696 = vmatpush1.msra.mxu0 0.0
        %697 = vmatprep.subr.mxu0 0.0
        %698 = vmatpush1.msra.mxu0 0.0
        %699 = vmatprep.mubr.f32.mxu0 0.0
        %700 = vmatmul.mubr.f32.gmra.mrb[0].mxu0 %v630
        %v701 = vpop.f32.mrb[0].mxu0
        %v702 = vadd.f32 %v626, %v701
        %v703 = vpop.f32.mrb[0].mxu0
        %704 = vmatprep.mubr.f32.mxu0 0.0
        %705 = vmatmul.mubr.f32.gmra.mrb[0].mxu0 %v633
        %v706 = vpop.f32.mrb[0].mxu0
        %v707 = vadd.f32 %v626, %v706
        %v708 = vpop.f32.mrb[0].mxu0
        %709 = vdwg.mxu0
        %v710 = vmul.f32 %v702, 0.2
        %v711 = vmul.f32 %v707, 0.2
        %v712 = vmax.f32 %v702, %v710
        %v713 = vmax.f32 %v707, %v711
        %v714 = vld [vmem:[%s7] sm:$0xff]
        %v715 = vld [vmem:[%s7 + $0x8] sm:$0xff]
        %v716 = vld [vmem:[%s7 + $0x10] sm:$0xff]
        %v717 = vld [vmem:[%s7 + $0x18] sm:$0xff]
        %v718 = vld [vmem:[%s8] sm:$0x1]
        %v720 = vlaneseq
        %v721 = vshrl.u32 %v720, 7
        %v722 = vsub.s32 0, %v721
        %v723 = vrot.slane %v718, %v722
        %v726 = vsel %vm628, %v712, 0
        %v729 = vsel %vm628, %v713, 0
        %731 = vmatprep.subr.mxu0 0.0
        %732 = vmatpush1.msra.mxu0 %v714
        %733 = vmatprep.subr.mxu0 0.0
        %734 = vmatpush1.msra.mxu0 %v715
        %735 = vmatprep.subr.mxu0 0.0
        %736 = vmatpush1.msra.mxu0 %v716
        %737 = vmatprep.subr.mxu0 0.0
        %738 = vmatpush1.msra.mxu0 %v717
        %739 = vmatprep.subr.mxu0 0.0
        %740 = vmatpush1.msra.mxu0 0.0
        %741 = vmatprep.subr.mxu0 0.0
        %742 = vmatpush1.msra.mxu0 0.0
        %743 = vmatprep.subr.mxu0 0.0
        %744 = vmatpush1.msra.mxu0 0.0
        %745 = vmatprep.subr.mxu0 0.0
        %746 = vmatpush1.msra.mxu0 0.0
        %747 = vmatprep.subr.mxu0 0.0
        %748 = vmatpush1.msra.mxu0 0.0
        %749 = vmatprep.subr.mxu0 0.0
        %750 = vmatpush1.msra.mxu0 0.0
        %751 = vmatprep.subr.mxu0 0.0
        %752 = vmatpush1.msra.mxu0 0.0
        %753 = vmatprep.subr.mxu0 0.0
        %754 = vmatpush1.msra.mxu0 0.0
        %755 = vmatprep.subr.mxu0 0.0
        %756 = vmatpush1.msra.mxu0 0.0
        %757 = vmatprep.subr.mxu0 0.0
        %758 = vmatpush1.msra.mxu0 0.0
        %759 = vmatprep.subr.mxu0 0.0
        %760 = vmatpush1.msra.mxu0 0.0
        %761 = vmatprep.subr.mxu0 0.0
        %762 = vmatpush1.msra.mxu0 0.0
        %763 = vmatprep.subr.mxu0 0.0
        %764 = vmatpush1.msra.mxu0 0.0
        %765 = vmatprep.subr.mxu0 0.0
        %766 = vmatpush1.msra.mxu0 0.0
        %767 = vmatprep.subr.mxu0 0.0
        %768 = vmatpush1.msra.mxu0 0.0
        %769 = vmatprep.subr.mxu0 0.0
        %770 = vmatpush1.msra.mxu0 0.0
        %771 = vmatprep.subr.mxu0 0.0
        %772 = vmatpush1.msra.mxu0 0.0
        %773 = vmatprep.subr.mxu0 0.0
        %774 = vmatpush1.msra.mxu0 0.0
        %775 = vmatprep.subr.mxu0 0.0
        %776 = vmatpush1.msra.mxu0 0.0
        %777 = vmatprep.subr.mxu0 0.0
        %778 = vmatpush1.msra.mxu0 0.0
        %779 = vmatprep.subr.mxu0 0.0
        %780 = vmatpush1.msra.mxu0 0.0
        %781 = vmatprep.subr.mxu0 0.0
        %782 = vmatpush1.msra.mxu0 0.0
        %783 = vmatprep.subr.mxu0 0.0
        %784 = vmatpush1.msra.mxu0 0.0
        %785 = vmatprep.subr.mxu0 0.0
        %786 = vmatpush1.msra.mxu0 0.0
        %787 = vmatprep.subr.mxu0 0.0
        %788 = vmatpush1.msra.mxu0 0.0
        %789 = vmatprep.subr.mxu0 0.0
        %790 = vmatpush1.msra.mxu0 0.0
        %791 = vmatprep.subr.mxu0 0.0
        %792 = vmatpush1.msra.mxu0 0.0
        %793 = vmatprep.subr.mxu0 0.0
        %794 = vmatpush1.msra.mxu0 0.0
        %795 = vmatprep.mubr.f32.mxu0 0.0
        %796 = vmatmul.mubr.f32.gmra.mrb[0].mxu0 %v726
        %v797 = vpop.f32.mrb[0].mxu0
        %v798 = vadd.f32 %v723, %v797
        %v799 = vpop.f32.mrb[0].mxu0
        %800 = vmatprep.mubr.f32.mxu0 0.0
        %801 = vmatmul.mubr.f32.gmra.mrb[0].mxu0 %v729
        %v802 = vpop.f32.mrb[0].mxu0
        %v803 = vadd.f32 %v723, %v802
        %v804 = vpop.f32.mrb[0].mxu0
        %805 = vdwg.mxu0
        %v806 = vmul.f32 %v798, 0.2
        %v807 = vmul.f32 %v803, 0.2
        %v808 = vmax.f32 %v798, %v806
        %v809 = vmax.f32 %v803, %v807
        %v810 = vld [vmem:[%s9] sm:$0xff]
        %v811 = vld [vmem:[%s9 + $0x8] sm:$0xff]
        %v812 = vld [vmem:[%s9 + $0x10] sm:$0xff]
        %v813 = vld [vmem:[%s9 + $0x18] sm:$0xff]
        %v814 = vld [vmem:[%s9 + $0x20] sm:$0xff]
        %v815 = vld [vmem:[%s9 + $0x28] sm:$0xff]
        %v816 = vld [vmem:[%s9 + $0x30] sm:$0xff]
        %v817 = vld [vmem:[%s9 + $0x38] sm:$0xff]
        %v818 = vld [vmem:[%s10] sm:$0x1]
        %v820 = vlaneseq
        %v821 = vshrl.u32 %v820, 7
        %v822 = vsub.s32 0, %v821
        %v823 = vrot.slane %v818, %v822
        %v826 = vsel %vm531, %v808, 0
        %v829 = vsel %vm531, %v809, 0
        %831 = vmatprep.subr.mxu0 0.0
        %832 = vmatpush1.msra.mxu0 %v810
        %833 = vmatprep.subr.mxu0 0.0
        %834 = vmatpush1.msra.mxu0 %v811
        %835 = vmatprep.subr.mxu0 0.0
        %836 = vmatpush1.msra.mxu0 %v812
        %837 = vmatprep.subr.mxu0 0.0
        %838 = vmatpush1.msra.mxu0 %v813
        %839 = vmatprep.subr.mxu0 0.0
        %840 = vmatpush1.msra.mxu0 %v814
        %841 = vmatprep.subr.mxu0 0.0
        %842 = vmatpush1.msra.mxu0 %v815
        %843 = vmatprep.subr.mxu0 0.0
        %844 = vmatpush1.msra.mxu0 %v816
        %845 = vmatprep.subr.mxu0 0.0
        %846 = vmatpush1.msra.mxu0 %v817
        %847 = vmatprep.subr.mxu0 0.0
        %848 = vmatpush1.msra.mxu0 0.0
        %849 = vmatprep.subr.mxu0 0.0
        %850 = vmatpush1.msra.mxu0 0.0
        %851 = vmatprep.subr.mxu0 0.0
        %852 = vmatpush1.msra.mxu0 0.0
        %853 = vmatprep.subr.mxu0 0.0
        %854 = vmatpush1.msra.mxu0 0.0
        %855 = vmatprep.subr.mxu0 0.0
        %856 = vmatpush1.msra.mxu0 0.0
        %857 = vmatprep.subr.mxu0 0.0
        %858 = vmatpush1.msra.mxu0 0.0
        %859 = vmatprep.subr.mxu0 0.0
        %860 = vmatpush1.msra.mxu0 0.0
        %861 = vmatprep.subr.mxu0 0.0
        %862 = vmatpush1.msra.mxu0 0.0
        %863 = vmatprep.subr.mxu0 0.0
        %864 = vmatpush1.msra.mxu0 0.0
        %865 = vmatprep.subr.mxu0 0.0
        %866 = vmatpush1.msra.mxu0 0.0
        %867 = vmatprep.subr.mxu0 0.0
        %868 = vmatpush1.msra.mxu0 0.0
        %869 = vmatprep.subr.mxu0 0.0
        %870 = vmatpush1.msra.mxu0 0.0
        %871 = vmatprep.subr.mxu0 0.0
        %872 = vmatpush1.msra.mxu0 0.0
        %873 = vmatprep.subr.mxu0 0.0
        %874 = vmatpush1.msra.mxu0 0.0
        %875 = vmatprep.subr.mxu0 0.0
        %876 = vmatpush1.msra.mxu0 0.0
        %877 = vmatprep.subr.mxu0 0.0
        %878 = vmatpush1.msra.mxu0 0.0
        %879 = vmatprep.subr.mxu0 0.0
        %880 = vmatpush1.msra.mxu0 0.0
        %881 = vmatprep.subr.mxu0 0.0
        %882 = vmatpush1.msra.mxu0 0.0
        %883 = vmatprep.subr.mxu0 0.0
        %884 = vmatpush1.msra.mxu0 0.0
        %885 = vmatprep.subr.mxu0 0.0
        %886 = vmatpush1.msra.mxu0 0.0
        %887 = vmatprep.subr.mxu0 0.0
        %888 = vmatpush1.msra.mxu0 0.0
        %889 = vmatprep.subr.mxu0 0.0
        %890 = vmatpush1.msra.mxu0 0.0
        %891 = vmatprep.subr.mxu0 0.0
        %892 = vmatpush1.msra.mxu0 0.0
        %893 = vmatprep.subr.mxu0 0.0
        %894 = vmatpush1.msra.mxu0 0.0
        %895 = vmatprep.mubr.f32.mxu0 0.0
        %896 = vmatmul.mubr.f32.gmra.mrb[0].mxu0 %v826
        %v897 = vpop.f32.mrb[0].mxu0
        %v898 = vadd.f32 %v823, %v897
        %v899 = vpop.f32.mrb[0].mxu0
        %900 = vmatprep.mubr.f32.mxu0 0.0
        %901 = vmatmul.mubr.f32.gmra.mrb[0].mxu0 %v829
        %v902 = vpop.f32.mrb[0].mxu0
        %v903 = vadd.f32 %v823, %v902
        %v904 = vpop.f32.mrb[0].mxu0
        %905 = vdwg.mxu0
        %906 = vst [vmem:[%s392] sm:$0xff] %v898
        %907 = vst [vmem:[%s392 + $0x8] sm:$0xff] %v903
        %s908 = sand.u32 %s269, 1
        %s909 = scalar_lea.sflag [#allocation3], %s908
        %s910 = sand.u32 %s269, 1
        %s911 = smul.addr %s910, 16
        %s912 = scalar_lea.vmem [#allocation2], %s911
        // Predicated region
        $region65: #{tpu_custom_call.1} parent=63 // pred_check
          %p913 = pneg %p279
        $region66: #{tpu_custom_call.1} parent=63 // pred_check_branch
          %915 = sbr.rel (%p913) target = $region68
        $region67: #{tpu_custom_call.1} parent=63 // pred_region
          %s916 = smul.u32 2, %s25
          %s917 = ssub.s32 3, %s916
          %p918 = scmp.lt.s32.totalorder %s917, 2
          %s919 = scalar_select %p918, %s917, 2
          %s920 = smul.u32 128, %s919
          %s922 = ssub.s32 256, %s920
          %923 = vsyncadd %s909, %s922
          %p924 = scmp.ne.s32.totalorder 0, %s920
          %s925 = smul.addr %s916, 128
          %s926 = scalar_lea.hbm %s11, %s925
          %s927 = smul.u32 8, %s919
          %s928 = sshll.u32 %s912, 4
          %s929 = int_to_ptr.vmem [resolvable:$true] %s928
          %s930 = sshll.u32 %s927, 4
          %934 = dma.vmem_to_hbm [thread:$0]  (%p924), %s929, %s930, %s926, %s909, 128, 128, 8
        $region68: #{tpu_custom_call.1} parent=63 // pred_fallthru
          _
      $region64: #{tpu_custom_call.1} parent=5 // pred_fallthru
        _
      %p935 = scmp.le.s32.totalorder 2, %s20
      // Predicated region
      $region69: #{tpu_custom_call.1} parent=5 // pred_check
        %p936 = pneg %p935
      $region70: #{tpu_custom_call.1} parent=5 // pred_check_branch
        %938 = sbr.rel (%p936) target = $region72
      $region71: #{tpu_custom_call.1} parent=5 // pred_region
        %s939 = ssub.s32 %s20, 2
        // Predicated region
        $region73: #{tpu_custom_call.1} parent=71 // pred_check
          %p940 = pneg %p285
        $region74: #{tpu_custom_call.1} parent=71 // pred_check_branch
          %942 = sbr.rel (%p940) target = $region76
        $region75: #{tpu_custom_call.1} parent=71 // pred_region
          %s943 = sand.u32 %s270, 1
          %s944 = scalar_lea.sflag [#allocation3], %s943
          %s945 = sand.u32 %s270, 1
          %s946 = smul.addr %s945, 16
          %s947 = scalar_lea.vmem [#allocation2], %s946
          %948 = dma.done %s944, 256
        $region76: #{tpu_custom_call.1} parent=71 // pred_fallthru
          _
      $region72: #{tpu_custom_call.1} parent=5 // pred_fallthru
        _
    $region6: #{tpu_custom_call.1} parent=1 // loop_footer
      %s24 = sadd.s32 1, %s20
    $region7: #{tpu_custom_call.1} parent=1 // loop_footer_branch
      %19 = sbr.rel target = $region3
    $region8: #{tpu_custom_call.1} parent=1 // loop_exit
      _
    %949 = vsyncpa [#allocation3], 1
    %s950 = scalar_lea.sflag [#allocation3], 1
    %951 = vsyncpa %s950, 1

</llo_original>
